<compile_context>
chip_gen: v6e
topology: v6e:2x2x1
jax: 0.10.0
libtpu: 0.0.40
codegen_flags: <defaults>
</compile_context>

<pallas_src>
import jax
import jax.numpy as jnp
from jax.experimental import pallas as pl
from jax.experimental.pallas import tpu as pltpu

EPS = 1e-5


def prenorm_kernel(x_ref, w_ref, b_ref, o_ref):
    # x_ref: (C, T) block — channels on sublanes, spatial on lanes.
    x = x_ref[...].astype(jnp.float32)

    # --- ChanNorm stats: one-pass, reduce over channel (sublane) axis ---
    mean = jnp.mean(x, axis=0, keepdims=True)            # (1, T)
    mean_sq = jnp.mean(x * x, axis=0, keepdims=True)     # (1, T)
    var = jnp.maximum(mean_sq - mean * mean, 0.0)        # biased variance
    # (sqrt(var) + eps) reciprocal on the EUP (approx) — only a (1, T) vector.
    inv = pl.reciprocal(jnp.sqrt(var) + EPS, approx=True)
    xn = (x - mean) * inv                                 # (C, T); g/b folded into W/b

    # --- fn: 1x1 conv == channel matmul, out = W' @ xn + b' ---
    w = w_ref[...]                                        # (C_out, C_in), affine-folded
    y = jnp.dot(w, xn.astype(w.dtype), preferred_element_type=jnp.float32)
    y = y + b_ref[...].astype(jnp.float32)                # (C, 1) broadcast

    o_ref[...] = y.astype(o_ref.dtype)


def _pick_spatial_tile(hw_pad, n, c, itemsize, budget_bytes=32 << 20, max_tile=2048):
    """Largest multiple-of-128 divisor of hw_pad (<= max_tile) whose true
    per-step VMEM footprint fits the budget, preferring tiles that leave at
    least 2 grid steps so both TensorCores (v7x) get work.

    footprint(T) ~= double-buffered in + out  : 4 * itemsize * C * T
                    + ~3 f32 temporaries      : 12 * C * T
                    + resident weights/bias   : 2 * C*C*itemsize + small
    """
    per_lane = (4 * itemsize + 12) * c
    fixed = 2 * c * c * itemsize + 8 * c * itemsize
    cands = [t for t in range(128, min(hw_pad, max_tile) + 1, 128) if hw_pad % t == 0]
    fitting = [t for t in cands if fixed + per_lane * t <= budget_bytes]
    if not fitting:
        return 128
    for t in sorted(fitting, reverse=True):
        if n * (hw_pad // t) >= 2:
            return t
    return fitting[-1]


def _footprint_bytes(tile_s, c, itemsize):
    return (4 * itemsize + 12) * c * tile_s + 2 * c * c * itemsize + 8 * c * itemsize


def prenorm_pallas(x_nchw, g, b, conv_w, conv_b):
    """x_nchw: (N, C, H, W).  g, b: (1, C, 1, 1).  conv_w: (C_out, C_in, 1, 1),
    conv_b: (C_out,).  Returns (N, C, H, W)."""
    N, C, H, W = x_nchw.shape
    HW = H * W
    itemsize = jnp.dtype(x_nchw.dtype).itemsize

    # Free reshape; pad spatial to a multiple of 128 for lane-dense blocks.
    x = x_nchw.reshape(N, C, HW)
    HW_pad = ((HW + 127) // 128) * 128
    if HW_pad != HW:
        x = jnp.pad(x, ((0, 0), (0, 0), (0, HW_pad - HW)))

    # Fold the ChanNorm affine into the conv:  y = W @ (xn*g + b) + cb
    #                                            = (W*g) @ xn + (W @ b + cb)
    w2 = conv_w.reshape(C, C)                             # (C_out, C_in)
    g_row = g.reshape(1, C).astype(jnp.float32)
    b_col = b.reshape(C, 1).astype(jnp.float32)
    w_folded = (w2.astype(jnp.float32) * g_row).astype(x_nchw.dtype)
    b_folded = (jnp.dot(w2.astype(jnp.float32), b_col)
                + conv_b.reshape(C, 1).astype(jnp.float32))  # (C, 1) f32

    tile_s = _pick_spatial_tile(HW_pad, N, C, itemsize)
    grid = (N, HW_pad // tile_s)

    footprint = _footprint_bytes(tile_s, C, itemsize)
    # Explicit scoped-VMEM limit: footprint + headroom, >= 16 MiB, but kept
    # well under v7x's 64 MiB physical VMEM.
    vmem_limit = int(min(max(footprint + (8 << 20), 16 << 20), 48 << 20))

    cost = pl.CostEstimate(
        flops=2 * N * HW_pad * C * C + 6 * N * HW_pad * C,
        transcendentals=2 * N * HW_pad,                   # sqrt + reciprocal per pixel
        bytes_accessed=2 * N * C * HW_pad * itemsize + (C * C + C) * itemsize,
    )

    out = pl.pallas_call(
        prenorm_kernel,
        out_shape=jax.ShapeDtypeStruct((N, C, HW_pad), x_nchw.dtype),
        grid_spec=pltpu.PrefetchScalarGridSpec(
            num_scalar_prefetch=0,
            grid=grid,
            in_specs=[
                # Squeeze the size-1 batch dim -> kernel sees a clean (C, T) tile.
                pl.BlockSpec((None, C, tile_s), lambda n, s: (n, 0, s)),
                pl.BlockSpec((C, C), lambda n, s: (0, 0)),
                pl.BlockSpec((C, 1), lambda n, s: (0, 0)),
            ],
            out_specs=pl.BlockSpec((None, C, tile_s), lambda n, s: (n, 0, s)),
        ),
        compiler_params=pltpu.CompilerParams(
            dimension_semantics=("parallel", "parallel"),
            vmem_limit_bytes=vmem_limit),
        cost_estimate=cost,
    )(x, w_folded, b_folded)

    if HW_pad != HW:
        out = out[:, :, :HW]
    return out.reshape(N, C, H, W)


def prenorm_reference(x, g, b, conv_w, conv_b):
    """Pure-JAX reference matching the PyTorch forward (NCHW)."""
    mean = jnp.mean(x, axis=1, keepdims=True)
    var = jnp.mean((x - mean) ** 2, axis=1, keepdims=True)
    std = jnp.sqrt(var)
    xn = (x - mean) / (std + EPS) * g + b
    y = jnp.einsum('nihw,oi->nohw', xn,
                   conv_w.reshape(conv_w.shape[0], conv_w.shape[1]))
    return y + conv_b.reshape(1, -1, 1, 1)


if __name__ == "__main__":
    key = jax.random.PRNGKey(0)
    k_x, k_w, k_wb = jax.random.split(key, 3)

    N, C, H, W = 2, 4, 16, 16
    x = jax.random.normal(k_x, (N, C, H, W), dtype=jnp.float32)

    # ChanNorm params (PyTorch init: ones / zeros)
    g = jnp.ones((1, C, 1, 1), dtype=jnp.float32)
    b = jnp.zeros((1, C, 1, 1), dtype=jnp.float32)

    # fn = Conv2d(C, C, kernel_size=1) — deterministic synthetic init
    conv_w = jax.random.normal(k_w, (C, C, 1, 1), dtype=jnp.float32) * 0.1
    conv_b = jax.random.normal(k_wb, (C,), dtype=jnp.float32) * 0.1

    out = prenorm_pallas(x, g, b, conv_w, conv_b)
    out = jax.block_until_ready(out)

    ref = prenorm_reference(x, g, b, conv_w, conv_b)
    assert out.shape == (N, C, H, W)
    # 2e-3 tolerance: approx (EUP) reciprocal + one-pass variance vs the exact
    # two-pass f32 reference.
    assert jnp.allclose(out, ref, atol=2e-3, rtol=2e-3), "mismatch vs reference"

    print("KERNEL_OK")
</pallas_src>

<mosaic_0001>
module attributes {stable_mosaic.version = 11 : i64} {
  func.func @prenorm_kernel(%arg0: i32, %arg1: i32, %arg2: memref<1x4x256xf32, #tpu.memory_space<vmem>>, %arg3: memref<4x4xf32, #tpu.memory_space<vmem>>, %arg4: memref<4x1xf32, #tpu.memory_space<vmem>>, %arg5: memref<1x4x256xf32, #tpu.memory_space<vmem>>) attributes {dimension_semantics = [#tpu.dimension_semantics<parallel>, #tpu.dimension_semantics<parallel>], iteration_bounds = array<i64: 2, 1>, scalar_prefetch = 0 : i64, scratch_operands = 0 : i64, tpu.core_type = #tpu.core_type<tc>, window_params = [{transform_indices = @transform_0, window_bounds = array<i64: 1, 4, 256>}, {pipeline_mode = #tpu.pipeline_mode<synchronous>, transform_indices = @transform_1, window_bounds = array<i64: 4, 4>}, {pipeline_mode = #tpu.pipeline_mode<synchronous>, transform_indices = @transform_2, window_bounds = array<i64: 4, 1>}, {transform_indices = @transform_3, window_bounds = array<i64: 1, 4, 256>}]} {
    %c0 = arith.constant 0 : index
    %c0_0 = arith.constant 0 : index
    %c0_1 = arith.constant 0 : index
    %0 = vector.load %arg2[%c0, %c0_0, %c0_1] : memref<1x4x256xf32, #tpu.memory_space<vmem>>, vector<1x4x256xf32>
    %1 = vector.shape_cast %0 : vector<1x4x256xf32> to vector<4x256xf32>
    %cst = arith.constant dense<0.000000e+00> : vector<256xf32>
    %2 = vector.multi_reduction <add>, %1, %cst [0] : vector<4x256xf32> to vector<256xf32>
    %3 = vector.shape_cast %2 : vector<256xf32> to vector<1x256xf32>
    %cst_2 = arith.constant 4.000000e+00 : f32
    %4 = vector.broadcast %cst_2 : f32 to vector<1x256xf32>
    %5 = arith.divf %3, %4 : vector<1x256xf32>
    %6 = arith.mulf %1, %1 : vector<4x256xf32>
    %cst_3 = arith.constant dense<0.000000e+00> : vector<256xf32>
    %7 = vector.multi_reduction <add>, %6, %cst_3 [0] : vector<4x256xf32> to vector<256xf32>
    %8 = vector.shape_cast %7 : vector<256xf32> to vector<1x256xf32>
    %cst_4 = arith.constant 4.000000e+00 : f32
    %9 = vector.broadcast %cst_4 : f32 to vector<1x256xf32>
    %10 = arith.divf %8, %9 : vector<1x256xf32>
    %11 = arith.mulf %5, %5 : vector<1x256xf32>
    %12 = arith.subf %10, %11 : vector<1x256xf32>
    %cst_5 = arith.constant 0.000000e+00 : f32
    %13 = vector.broadcast %cst_5 : f32 to vector<1x256xf32>
    %14 = arith.maximumf %12, %13 : vector<1x256xf32>
    %15 = math.sqrt %14 : vector<1x256xf32>
    %cst_6 = arith.constant 9.99999974E-6 : f32
    %16 = vector.broadcast %cst_6 : f32 to vector<1x256xf32>
    %17 = arith.addf %15, %16 : vector<1x256xf32>
    %18 = tpu.reciprocal %17 {approx = true} : vector<1x256xf32> -> vector<1x256xf32>
    %19 = vector.broadcast %5 : vector<1x256xf32> to vector<4x256xf32>
    %20 = arith.subf %1, %19 : vector<4x256xf32>
    %21 = vector.broadcast %18 : vector<1x256xf32> to vector<4x256xf32>
    %22 = arith.mulf %20, %21 : vector<4x256xf32>
    %c0_7 = arith.constant 0 : index
    %c0_8 = arith.constant 0 : index
    %23 = vector.load %arg3[%c0_7, %c0_8] : memref<4x4xf32, #tpu.memory_space<vmem>>, vector<4x4xf32>
    %cst_9 = arith.constant dense<0.000000e+00> : vector<4x256xf32>
    %24 = tpu.matmul %23, %22, %cst_9 {dimension_numbers = #tpu.dot_dimension_numbers<[1], [0], [0], [1], [0, 0, 1, 1], [], []>} : vector<4x4xf32>, vector<4x256xf32>, vector<4x256xf32> -> vector<4x256xf32>
    %c0_10 = arith.constant 0 : index
    %c0_11 = arith.constant 0 : index
    %25 = vector.load %arg4[%c0_10, %c0_11] : memref<4x1xf32, #tpu.memory_space<vmem>>, vector<4x1xf32>
    %26 = vector.broadcast %25 : vector<4x1xf32> to vector<4x256xf32>
    %27 = arith.addf %24, %26 : vector<4x256xf32>
    %c0_12 = arith.constant 0 : index
    %c0_13 = arith.constant 0 : index
    %c0_14 = arith.constant 0 : index
    %28 = vector.load %arg5[%c0_12, %c0_13, %c0_14] : memref<1x4x256xf32, #tpu.memory_space<vmem>>, vector<1x4x256xf32>
    %29 = vector.shape_cast %28 : vector<1x4x256xf32> to vector<4x256xf32>
    %30 = vector.shape_cast %27 : vector<4x256xf32> to vector<1x4x256xf32>
    tpu.vector_store %arg5[%c0_12, %c0_13, %c0_14], %30 {strides = array<i32>} : memref<1x4x256xf32, #tpu.memory_space<vmem>>, vector<1x4x256xf32>,
    return
  }
  func.func @transform_0(%arg0: i32, %arg1: i32) -> (i32, i32, i32) {
    %c0_i32 = arith.constant 0 : i32
    %c0_i32_0 = arith.constant 0 : i32
    return %arg0, %c0_i32, %arg1 : i32, i32, i32
  }
  func.func @transform_1(%arg0: i32, %arg1: i32) -> (i32, i32) {
    %c0_i32 = arith.constant 0 : i32
    %c0_i32_0 = arith.constant 0 : i32
    %c0_i32_1 = arith.constant 0 : i32
    return %c0_i32, %c0_i32_0 : i32, i32
  }
  func.func @transform_2(%arg0: i32, %arg1: i32) -> (i32, i32) {
    %c0_i32 = arith.constant 0 : i32
    %c0_i32_0 = arith.constant 0 : i32
    %c0_i32_1 = arith.constant 0 : i32
    return %c0_i32, %c0_i32_0 : i32, i32
  }
  func.func @transform_3(%arg0: i32, %arg1: i32) -> (i32, i32, i32) {
    %c0_i32 = arith.constant 0 : i32
    %c0_i32_0 = arith.constant 0 : i32
    return %arg0, %c0_i32, %arg1 : i32, i32, i32
  }
}

</mosaic_0001>

<llo_original>
// kernel: tpu_custom_call.1
$region0: #{tpu_custom_call.1}
  #allocation0 [shape = 'u32[]', space=smem, size = 0x4, offset = 0x4, fixed_abs, tag = 'smem constant byte address 0x4 - core index']
  #allocation1 [shape = 'u32[144,128]{1,0:T(1,128)}', space=vmem, size = 0x12000, scoped, tag = 'internal scratch']
  %s0 = inlined_call_operand.hbm [shape: f32[2,4,256], index: 0, kind: input, shape index: {}]
  %s1 = inlined_call_operand.vmem [shape: f32[4,4], index: 1, kind: input, shape index: {}]
  %s2 = inlined_call_operand.vmem [shape: f32[4,1], index: 2, kind: input, shape index: {}]
  %s3 = inlined_call_operand.hbm [shape: f32[2,4,256], index: 3, kind: output, shape index: {}]
  %s4 = sld [smem:[#allocation0]]
  $region49: #{tpu_custom_call.1} parent=0
    _
  %s6 = ssub.s32 1, %s4
  %s7 = scalar_select 0, %s6, %s4
  $region1: #{tpu_custom_call.1} parent=0
    #allocation2 [shape = 'u8[8192]{0}', space=vmem, size = 0x2000, scoped, tag = 'input window, operand 0']
    #allocation3 [shape = 's32[2]{0}', space=sflag, size = 0x8, scoped, tag = 'scoped memory for tpu_custom_call.1']
    #allocation4 [shape = 's32[2]{0}', space=sflag, size = 0x8, scoped, tag = 'scoped memory for tpu_custom_call.1']
    #allocation5 [shape = 'u8[8192]{0}', space=vmem, size = 0x2000, scoped, tag = 'output window, operand 0']
    %8 = vsyncpa [#allocation3], 0
    %s9 = scalar_lea.sflag [#allocation3], 1
    %10 = vsyncpa %s9, 0
    %11 = vsyncpa [#allocation4], 0
    %s12 = scalar_lea.sflag [#allocation4], 1
    %13 = vsyncpa %s12, 0
    loop: start=0, step=1, limit=4
    $region2: #{tpu_custom_call.1} parent=1 // loop_pre_header
      _
    $region3: #{tpu_custom_call.1} parent=1 // loop_header
      %s15 = sphi 0, %s19
      %p16 = scmp.ge.s32.totalorder %s15, 4
      %s22 = sphi 0, %s34
      %s23 = sphi 0, %s30
      %s24 = sphi 0, %s22
      %s25 = sphi 0, %s23
      %s26 = sphi 0, %s24
      %s27 = sphi 0, %s25
      %s39 = sphi 0, %s41
      %s42 = sphi 0, %s39
      %s43 = sphi 0, %s42
      %s59 = sphi 0, %s43
      %s63 = sphi 0, %s63
      %s65 = sphi 0, %s63
      %s66 = sphi 0, %s65
      %s80 = sphi 0, %s66
      %s84 = sphi 0, %s84
      %s86 = sphi 0, %s84
      %s87 = sphi 0, %s86
      %s101 = sphi 0, %s87
      %s109 = sphi 0, %s111
      %s112 = sphi 0, %s109
      %s113 = sphi 0, %s112
      %s129 = sphi 0, %s113
    $region4: #{tpu_custom_call.1} parent=1 // loop_header_branch
      %18 = sbr.rel (%p16) target = $region8
    $region5: #{tpu_custom_call.1} parent=1 // loop_body
      %s20 = ssub.s32 %s15, 1
      %s21 = ssub.s32 %s15, 2
      %s28 = sadd.s32 1, %s23
      %p29 = scmp.ge.s32.totalorder %s28, 1
      %s30 = scalar_select %p29, 0, %s28
      %s31 = sadd.s32 1, %s22
      %s32 = scalar_select %p29, %s31, %s22
      %p33 = scmp.ge.s32.totalorder %s32, 2
      %s34 = scalar_select %p33, 0, %s32
      %s35 = ssub.s32 %s22, %s34
      %s36 = ssub.s32 %s23, %s30
      %s37 = sor.u32 %s35, %s36
      %p38 = scmp.eq.s32.totalorder %s37, 0
      %s40 = sadd.s32 %s39, 1
      %s41 = scalar_select %p38, %s39, %s40
      %p44 = pneg %p38
      %p45 = scmp.eq.s32.totalorder %s15, 1
      %p46 = por %p44, %p45
      %p47 = scmp.ne.s32.totalorder %s39, %s42
      %p48 = scmp.eq.s32.totalorder %s15, 0
      %p49 = por %p47, %p48
      %p50 = scmp.ne.s32.totalorder %s39, %s42
      %p51 = scmp.eq.s32.totalorder %s20, 1
      %p52 = por %p50, %p51
      %p53 = scmp.ne.s32.totalorder %s42, %s43
      %p54 = scmp.eq.s32.totalorder %s20, 0
      %p55 = por %p53, %p54
      %p56 = scmp.ne.s32.totalorder %s42, %s43
      %p57 = scmp.eq.s32.totalorder %s21, 1
      %p58 = por %p56, %p57
      %p60 = scmp.ne.s32.totalorder %s43, %s59
      %p61 = scmp.eq.s32.totalorder %s21, 0
      %p62 = por %p60, %p61
      %s64 = sadd.s32 %s63, 1
      %p67 = scmp.eq.s32.totalorder %s15, 1
      %p68 = scmp.ne.s32.totalorder %s63, %s65
      %p69 = scmp.eq.s32.totalorder %s15, 0
      %p70 = por %p68, %p69
      %p71 = scmp.ne.s32.totalorder %s63, %s65
      %p72 = scmp.eq.s32.totalorder %s20, 1
      %p73 = por %p71, %p72
      %p74 = scmp.ne.s32.totalorder %s65, %s66
      %p75 = scmp.eq.s32.totalorder %s20, 0
      %p76 = por %p74, %p75
      %p77 = scmp.ne.s32.totalorder %s65, %s66
      %p78 = scmp.eq.s32.totalorder %s21, 1
      %p79 = por %p77, %p78
      %p81 = scmp.ne.s32.totalorder %s66, %s80
      %p82 = scmp.eq.s32.totalorder %s21, 0
      %p83 = por %p81, %p82
      %s85 = sadd.s32 %s84, 1
      %p88 = scmp.eq.s32.totalorder %s15, 1
      %p89 = scmp.ne.s32.totalorder %s84, %s86
      %p90 = scmp.eq.s32.totalorder %s15, 0
      %p91 = por %p89, %p90
      %p92 = scmp.ne.s32.totalorder %s84, %s86
      %p93 = scmp.eq.s32.totalorder %s20, 1
      %p94 = por %p92, %p93
      %p95 = scmp.ne.s32.totalorder %s86, %s87
      %p96 = scmp.eq.s32.totalorder %s20, 0
      %p97 = por %p95, %p96
      %p98 = scmp.ne.s32.totalorder %s86, %s87
      %p99 = scmp.eq.s32.totalorder %s21, 1
      %p100 = por %p98, %p99
      %p102 = scmp.ne.s32.totalorder %s87, %s101
      %p103 = scmp.eq.s32.totalorder %s21, 0
      %p104 = por %p102, %p103
      %s105 = ssub.s32 %s22, %s34
      %s106 = ssub.s32 %s23, %s30
      %s107 = sor.u32 %s105, %s106
      %p108 = scmp.eq.s32.totalorder %s107, 0
      %s110 = sadd.s32 %s109, 1
      %s111 = scalar_select %p108, %s109, %s110
      %p114 = pneg %p108
      %p115 = scmp.eq.s32.totalorder %s15, 1
      %p116 = por %p114, %p115
      %p117 = scmp.ne.s32.totalorder %s109, %s112
      %p118 = scmp.eq.s32.totalorder %s15, 0
      %p119 = por %p117, %p118
      %p120 = scmp.ne.s32.totalorder %s109, %s112
      %p121 = scmp.eq.s32.totalorder %s20, 1
      %p122 = por %p120, %p121
      %p123 = scmp.ne.s32.totalorder %s112, %s113
      %p124 = scmp.eq.s32.totalorder %s20, 0
      %p125 = por %p123, %p124
      %p126 = scmp.ne.s32.totalorder %s112, %s113
      %p127 = scmp.eq.s32.totalorder %s21, 1
      %p128 = por %p126, %p127
      %p130 = scmp.ne.s32.totalorder %s113, %s129
      %p131 = scmp.eq.s32.totalorder %s21, 0
      %p132 = por %p130, %p131
      %p133 = scmp.le.s32.totalorder 1, %s15
      %p134 = scmp.lt.s32.totalorder %s15, 3
      %p135 = pnand %p133, %p134
      %p136 = pneg %p135
      // Predicated region
      $region9: #{tpu_custom_call.1} parent=5 // pred_check
        _
      $region10: #{tpu_custom_call.1} parent=5 // pred_check_branch
        %138 = sbr.rel (%p135) target = $region12
      $region11: #{tpu_custom_call.1} parent=5 // pred_region
        %s139 = ssub.s32 %s15, 1
        // Predicated region
        $region13: #{tpu_custom_call.1} parent=11 // pred_check
          %p140 = pneg %p76
        $region14: #{tpu_custom_call.1} parent=11 // pred_check_branch
          %142 = sbr.rel (%p140) target = $region16
        $region15: #{tpu_custom_call.1} parent=11 // pred_region
          _
        $region16: #{tpu_custom_call.1} parent=11 // pred_fallthru
          _
        // Predicated region
        $region17: #{tpu_custom_call.1} parent=11 // pred_check
          %p143 = pneg %p97
        $region18: #{tpu_custom_call.1} parent=11 // pred_check_branch
          %145 = sbr.rel (%p143) target = $region20
        $region19: #{tpu_custom_call.1} parent=11 // pred_region
          _
        $region20: #{tpu_custom_call.1} parent=11 // pred_fallthru
          _
      $region12: #{tpu_custom_call.1} parent=5 // pred_fallthru
        _
      %p146 = scmp.lt.s32.totalorder %s15, 2
      // Predicated region
      $region21: #{tpu_custom_call.1} parent=5 // pred_check
        %p147 = pneg %p146
      $region22: #{tpu_custom_call.1} parent=5 // pred_check_branch
        %149 = sbr.rel (%p147) target = $region24
      $region23: #{tpu_custom_call.1} parent=5 // pred_region
        // Predicated region
        $region25: #{tpu_custom_call.1} parent=23 // pred_check
          %p150 = pneg %p49
        $region26: #{tpu_custom_call.1} parent=23 // pred_check_branch
          %152 = sbr.rel (%p150) target = $region28
        $region27: #{tpu_custom_call.1} parent=23 // pred_region
          %s153 = sand.u32 %s39, 1
          %s154 = scalar_lea.sflag [#allocation3], %s153
          %s155 = sand.u32 %s39, 1
          %s156 = smul.addr %s155, 8
          %s157 = scalar_lea.vmem [#allocation2], %s156
          %s158 = smul.u32 2, %s23
          %s160 = ssub.s32 128, 128
          %161 = vsyncadd %s154, %s160
          %s162 = smul.addr %s22, 2
          %s163 = sadd.s32 %s158, %s162
          %s164 = smul.addr %s163, 64
          %s165 = scalar_lea.hbm %s0, %s164
          %s167 = sshll.u32 %s157, 4
          %s168 = int_to_ptr.vmem [resolvable:$true] %s167
          %170 = dma.hbm_to_vmem [thread:$0]  %s165, 128, %s168, %s154
        $region28: #{tpu_custom_call.1} parent=23 // pred_fallthru
          _
      $region24: #{tpu_custom_call.1} parent=5 // pred_fallthru
        _
      %p171 = scmp.le.s32.totalorder 1, %s15
      %p172 = scmp.lt.s32.totalorder %s15, 3
      %p173 = pnand %p171, %p172
      %p174 = pneg %p173
      // Predicated region
      $region29: #{tpu_custom_call.1} parent=5 // pred_check
        _
      $region30: #{tpu_custom_call.1} parent=5 // pred_check_branch
        %176 = sbr.rel (%p173) target = $region32
      $region31: #{tpu_custom_call.1} parent=5 // pred_region
        %s177 = ssub.s32 %s15, 1
        %s178 = sand.u32 %s42, 1
        %s179 = scalar_lea.sflag [#allocation3], %s178
        %s180 = sand.u32 %s42, 1
        %s181 = smul.addr %s180, 8
        %s182 = scalar_lea.vmem [#allocation2], %s181
        // Predicated region
        $region33: #{tpu_custom_call.1} parent=31 // pred_check
          %p183 = pneg %p55
        $region34: #{tpu_custom_call.1} parent=31 // pred_check_branch
          %185 = sbr.rel (%p183) target = $region36
        $region35: #{tpu_custom_call.1} parent=31 // pred_region
          %186 = dma.done %s179, 128
        $region36: #{tpu_custom_call.1} parent=31 // pred_fallthru
          _
        %s187 = sand.u32 %s42, 1
        %s188 = scalar_lea.sflag [#allocation3], %s187
        %s189 = sand.u32 %s42, 1
        %s190 = smul.addr %s189, 8
        %s191 = scalar_lea.vmem [#allocation2], %s190
        %p192 = pneg %p55
        %p193 = pneg %p52
        %p194 = pneg %p76
        %p195 = pneg %p73
        %p196 = pneg %p97
        %p197 = pneg %p94
        %p198 = pneg %p125
        %p199 = pneg %p122
        %s200 = sand.u32 %s112, 1
        %s201 = scalar_lea.sflag [#allocation4], %s200
        %s202 = sand.u32 %s112, 1
        %s203 = smul.addr %s202, 8
        %s204 = scalar_lea.vmem [#allocation5], %s203
        %s205 = smul.u32 2, %s25
        %s206 = smul.u32 2, %s25
        %v207 = vld [vmem:[%s182] sm:$0xff]
        %v209 = vcombine.high %v207, %v207
        %vm211 = vcmask 1043456
        %v212 = vsel %vm211, %v207, 0.0
        %v213 = vrot.slane %v212, 4
        %v214 = vadd.f32 %v212, %v213
        %v215 = vrot.slane %v214, 2
        %v216 = vadd.f32 %v214, %v215
        %v217 = vrot.slane %v216, 1
        %v218 = vadd.f32 %v216, %v217
        %v219 = vsel %vm211, %v209, 0.0
        %v220 = vrot.slane %v219, 4
        %v221 = vadd.f32 %v219, %v220
        %v222 = vrot.slane %v221, 2
        %v223 = vadd.f32 %v221, %v222
        %v224 = vrot.slane %v223, 1
        %v225 = vadd.f32 %v223, %v224
        %v226 = vrcp.pop 4.0
        %v227 = vmul.f32 %v218, %v226
        %v228 = vmul.f32 %v225, %v226
        %v229 = vmul.f32 %v207, %v207
        %v231 = vcombine.high %v229, %v229
        %v233 = vsel %vm211, %v229, 0.0
        %v234 = vrot.slane %v233, 4
        %v235 = vadd.f32 %v233, %v234
        %v236 = vrot.slane %v235, 2
        %v237 = vadd.f32 %v235, %v236
        %v238 = vrot.slane %v237, 1
        %v239 = vadd.f32 %v237, %v238
        %v240 = vsel %vm211, %v231, 0.0
        %v241 = vrot.slane %v240, 4
        %v242 = vadd.f32 %v240, %v241
        %v243 = vrot.slane %v242, 2
        %v244 = vadd.f32 %v242, %v243
        %v245 = vrot.slane %v244, 1
        %v246 = vadd.f32 %v244, %v245
        %v247 = vmul.f32 %v239, %v226
        %v248 = vmul.f32 %v246, %v226
        %v249 = vmul.f32 %v227, %v227
        %v250 = vmul.f32 %v228, %v228
        %v251 = vsub.f32 %v247, %v249
        %v252 = vsub.f32 %v248, %v250
        %v253 = vmax.f32 %v251, 0.0
        %v254 = vmax.f32 %v252, 0.0
        %v255 = vrsqrt.pop %v253
        %v256 = vmul.f32 %v253, %v255
        %vm257 = vcmp.eq.f32.partialorder %v253, inf
        %v258 = vsel %vm257, %v253, %v256
        %vm259 = vcmp.eq.f32.partialorder %v253, 0.0
        %v260 = vand.u32 %v253, 2147483648
        %v261 = vsel %vm259, %v260, %v258
        %v262 = vrsqrt.pop %v254
        %v263 = vmul.f32 %v254, %v262
        %vm264 = vcmp.eq.f32.partialorder %v254, inf
        %v265 = vsel %vm264, %v254, %v263
        %vm266 = vcmp.eq.f32.partialorder %v254, 0.0
        %v267 = vand.u32 %v254, 2147483648
        %v268 = vsel %vm266, %v267, %v265
        %v269 = vadd.f32 %v261, 1e-05
        %v270 = vadd.f32 %v268, 1e-05
        %v271 = vrcp.pop %v269
        %v272 = vrcp.pop %v270
        %v275 = vcombine.low %v227, %v228
        %v277 = vsub.f32 %v207, %v275
        %v280 = vcombine.low %v271, %v272
        %v282 = vmul.f32 %v277, %v280
        %v283 = vld [vmem:[%s1] sm:$0xf]
        %v284 = vld [vmem:[%s2] sm:$0xf]
        %286 = vset.pattern.permute.xlu0 0
        %287 = vperm.xlu0 %286, %v284
        %v288 = vpop.permute.xlu0 %287
        %v291 = vcombine.high %v282, %v282
        %vm292 = vcmask 31744
        %v294 = vsel %vm292, %v283, 0
        %v296 = vsel %vm211, %v282, 0
        %v298 = vsel %vm211, %v291, 0
        %300 = vmatprep.subr.mxu0 0.0
        %301 = vmatpush1.msra.mxu0 0.0
        %302 = vmatprep.subr.mxu0 0.0
        %303 = vmatpush1.msra.mxu0 0.0
        %304 = vmatprep.subr.mxu0 0.0
        %305 = vmatpush1.msra.mxu0 0.0
        %306 = vmatprep.subr.mxu0 0.0
        %307 = vmatpush1.msra.mxu0 0.0
        %308 = vmatprep.subr.mxu0 0.0
        %309 = vmatpush1.msra.mxu0 0.0
        %310 = vmatprep.subr.mxu0 0.0
        %311 = vmatpush1.msra.mxu0 0.0
        %312 = vmatprep.subr.mxu0 0.0
        %313 = vmatpush1.msra.mxu0 0.0
        %314 = vmatprep.subr.mxu0 0.0
        %315 = vmatpush1.msra.mxu0 0.0
        %316 = vmatprep.subr.mxu0 0.0
        %317 = vmatpush1.msra.mxu0 0.0
        %318 = vmatprep.subr.mxu0 0.0
        %319 = vmatpush1.msra.mxu0 0.0
        %320 = vmatprep.subr.mxu0 0.0
        %321 = vmatpush1.msra.mxu0 0.0
        %322 = vmatprep.subr.mxu0 0.0
        %323 = vmatpush1.msra.mxu0 0.0
        %324 = vmatprep.subr.mxu0 0.0
        %325 = vmatpush1.msra.mxu0 0.0
        %326 = vmatprep.subr.mxu0 0.0
        %327 = vmatpush1.msra.mxu0 0.0
        %328 = vmatprep.subr.mxu0 0.0
        %329 = vmatpush1.msra.mxu0 0.0
        %330 = vmatprep.subr.mxu0 %v298
        %331 = vmatpush1.msra.mxu0 %v296
        %332 = vmatprep.subr.mxu0 0.0
        %333 = vmatpush2.msra.mxu0 0.0
        %334 = vmatprep.subr.mxu0 0.0
        %335 = vmatpush2.msra.mxu0 0.0
        %336 = vmatprep.subr.mxu0 0.0
        %337 = vmatpush2.msra.mxu0 0.0
        %338 = vmatprep.subr.mxu0 0.0
        %339 = vmatpush2.msra.mxu0 0.0
        %340 = vmatprep.subr.mxu0 0.0
        %341 = vmatpush2.msra.mxu0 0.0
        %342 = vmatprep.subr.mxu0 0.0
        %343 = vmatpush2.msra.mxu0 0.0
        %344 = vmatprep.subr.mxu0 0.0
        %345 = vmatpush2.msra.mxu0 0.0
        %346 = vmatprep.subr.mxu0 0.0
        %347 = vmatpush2.msra.mxu0 0.0
        %348 = vmatprep.subr.mxu0 0.0
        %349 = vmatpush2.msra.mxu0 0.0
        %350 = vmatprep.subr.mxu0 0.0
        %351 = vmatpush2.msra.mxu0 0.0
        %352 = vmatprep.subr.mxu0 0.0
        %353 = vmatpush2.msra.mxu0 0.0
        %354 = vmatprep.subr.mxu0 0.0
        %355 = vmatpush2.msra.mxu0 0.0
        %356 = vmatprep.subr.mxu0 0.0
        %357 = vmatpush2.msra.mxu0 0.0
        %358 = vmatprep.subr.mxu0 0.0
        %359 = vmatpush2.msra.mxu0 0.0
        %360 = vmatprep.subr.mxu0 0.0
        %361 = vmatpush2.msra.mxu0 0.0
        %362 = vmatprep.subr.mxu0 0.0
        %363 = vmatpush2.msra.mxu0 0.0
        %364 = vmatprep.mubr.f32.mxu0 0.0
        %365 = vmatmul.mubr.f32.gmra.mxu0 %v294
        %v366 = vpop.f32.mrf.mxu0
        %v367 = vadd.f32 %v288, %v366
        %v368 = vpop.f32.mrf.mxu0
        %v369 = vadd.f32 %v288, %v368
        %370 = vdwg.mxu0
        %v373 = vcombine.low %v367, %v369
        %375 = vst [vmem:[%s204] sm:$0xff] %v373
        %s376 = sand.u32 %s112, 1
        %s377 = scalar_lea.sflag [#allocation4], %s376
        %s378 = sand.u32 %s112, 1
        %s379 = smul.addr %s378, 8
        %s380 = scalar_lea.vmem [#allocation5], %s379
        // Predicated region
        $region37: #{tpu_custom_call.1} parent=31 // pred_check
          %p381 = pneg %p122
        $region38: #{tpu_custom_call.1} parent=31 // pred_check_branch
          %383 = sbr.rel (%p381) target = $region40
        $region39: #{tpu_custom_call.1} parent=31 // pred_region
          %s384 = smul.u32 2, %s25
          %s386 = ssub.s32 128, 128
          %387 = vsyncadd %s377, %s386
          %s388 = smul.addr %s24, 2
          %s389 = sadd.s32 %s384, %s388
          %s390 = smul.addr %s389, 64
          %s391 = scalar_lea.hbm %s3, %s390
          %s393 = sshll.u32 %s380, 4
          %s394 = int_to_ptr.vmem [resolvable:$true] %s393
          %396 = dma.vmem_to_hbm [thread:$0]  %s394, 128, %s391, %s377
        $region40: #{tpu_custom_call.1} parent=31 // pred_fallthru
          _
      $region32: #{tpu_custom_call.1} parent=5 // pred_fallthru
        _
      %p397 = scmp.le.s32.totalorder 2, %s15
      // Predicated region
      $region41: #{tpu_custom_call.1} parent=5 // pred_check
        %p398 = pneg %p397
      $region42: #{tpu_custom_call.1} parent=5 // pred_check_branch
        %400 = sbr.rel (%p398) target = $region44
      $region43: #{tpu_custom_call.1} parent=5 // pred_region
        %s401 = ssub.s32 %s15, 2
        // Predicated region
        $region45: #{tpu_custom_call.1} parent=43 // pred_check
          %p402 = pneg %p128
        $region46: #{tpu_custom_call.1} parent=43 // pred_check_branch
          %404 = sbr.rel (%p402) target = $region48
        $region47: #{tpu_custom_call.1} parent=43 // pred_region
          %s405 = sand.u32 %s113, 1
          %s406 = scalar_lea.sflag [#allocation4], %s405
          %s407 = sand.u32 %s113, 1
          %s408 = smul.addr %s407, 8
          %s409 = scalar_lea.vmem [#allocation5], %s408
          %410 = dma.done %s406, 128
        $region48: #{tpu_custom_call.1} parent=43 // pred_fallthru
          _
      $region44: #{tpu_custom_call.1} parent=5 // pred_fallthru
        _
    $region6: #{tpu_custom_call.1} parent=1 // loop_footer
      %s19 = sadd.s32 1, %s15
    $region7: #{tpu_custom_call.1} parent=1 // loop_footer_branch
      %14 = sbr.rel target = $region3
    $region8: #{tpu_custom_call.1} parent=1 // loop_exit
      _
    %411 = vsyncpa [#allocation3], 1
    %s412 = scalar_lea.sflag [#allocation3], 1
    %413 = vsyncpa %s412, 1
    %414 = vsyncpa [#allocation4], 1
    %s415 = scalar_lea.sflag [#allocation4], 1
    %416 = vsyncpa %s415, 1

</llo_original>
